<compile_context>
chip_gen: v5e
topology: v5e:2x2
jax: 0.10.0
libtpu: 0.0.40
codegen_flags: <defaults>
</compile_context>

<pallas_src>
import functools

import jax
import jax.numpy as jnp
from jax.experimental import pallas as pl
from jax.experimental.pallas import tpu as pltpu


def _round_up(x, m):
    return ((x + m - 1) // m) * m


def _cdiv(a, b):
    return -(-a // b)


def _tpu_generation():
    try:
        kind = jax.devices()[0].device_kind.lower()
    except Exception:  # pragma: no cover - defensive
        return "unknown"
    if "v7" in kind or "7x" in kind:
        return "v7x"
    if "v6" in kind:
        return "v6e"
    if "v5e" in kind or "v5 lite" in kind or "v5lite" in kind:
        return "v5e"
    if "v5" in kind:
        return "v5p"
    return "unknown"


# generation -> (tm_max for MXU roofline, VMEM budget ceiling, TensorCores per chip)
_GEN_CONFIG = {
    "v7x": (512, 48 << 20, 2),     # 64 MiB physical VMEM, ~310 FLOPs/byte crossover
    "v6e": (1024, 100 << 20, 1),   # 128 MiB VMEM, ~650 FLOPs/byte crossover
    "v5e": (512, 100 << 20, 1),    # 128 MiB VMEM, ~240 FLOPs/byte crossover
    "v5p": (1024, 100 << 20, 1),
    "unknown": (512, 64 << 20, 1),
}


def _ffn_kernel(x_ref, w13_ref, w2_ref, o_ref, acc_ref, *, th):
    # x_ref:   (tm, dp)      bf16 or f32 (cast in-kernel)
    # w13_ref: (dp, 2*th)    bf16  -> [w1 block h | w3 block h]
    # w2_ref:  (th, dp)      bf16
    # o_ref:   (tm, dp)      bf16 (or caller-chosen out dtype)
    # acc_ref: (tm, dp)      f32 scratch, persists across the hidden ("arbitrary") axis
    h = pl.program_id(1)

    @pl.when(h == 0)
    def _():
        acc_ref[...] = jnp.zeros_like(acc_ref)

    # bf16 feed for the MXU; no-op if the input slab is already bf16.
    x = x_ref[...].astype(jnp.bfloat16)

    # Fused gate + up projection: one MXU push instead of two on the same LHS.
    h13 = jnp.dot(x, w13_ref[...], preferred_element_type=jnp.float32)  # (tm, 2*th) f32
    h1 = h13[:, :th]          # static slice on a lane/vreg boundary (th % 128 == 0)
    h3 = h13[:, th:]
    # SiLU gate in f32 (EUP sigmoid; v5e has no bf16 VPU/EUP path).
    g = (h1 * jax.nn.sigmoid(h1)) * h3
    # Down projection for this hidden tile; accumulate in f32.
    acc_ref[...] += jnp.dot(g.astype(w2_ref.dtype), w2_ref[...],
                            preferred_element_type=jnp.float32)

    @pl.when(h == pl.num_programs(1) - 1)
    def _():
        o_ref[...] = acc_ref[...].astype(o_ref.dtype)


def prepare_ffn_weights(w1, w2, w3, *, th=256, lane=128, dtype=jnp.bfloat16):
    """One-time weight preparation (call at parameter-setup time, NOT per forward).

    w1, w3: (hidden, dim); w2: (dim, hidden)  [PyTorch nn.Linear layout].
    Transposes, casts to bf16, zero-pads dim/hidden to lane-dense multiples of 128,
    and interleaves w1/w3 column blocks of width `th` so a single (dp, 2*th) tile at
    hidden-block h holds [w1 block h | w3 block h] contiguously.
    """
    hidden, dim = w1.shape
    dp = _round_up(dim, lane)
    # th=256 fills the 256-deep MXU on v6e/v7x and halves grid steps; clamp for tiny models.
    th = max(lane, min(_round_up(th, lane), _round_up(hidden, lane)))
    hp = _round_up(hidden, th)

    w1t = jnp.zeros((dp, hp), dtype).at[:dim, :hidden].set(w1.T.astype(dtype))
    w3t = jnp.zeros((dp, hp), dtype).at[:dim, :hidden].set(w3.T.astype(dtype))
    w2t = jnp.zeros((hp, dp), dtype).at[:hidden, :dim].set(w2.T.astype(dtype))

    nh = hp // th
    w13t = jnp.stack([w1t.reshape(dp, nh, th), w3t.reshape(dp, nh, th)], axis=2)
    w13t = w13t.reshape(dp, 2 * hp)   # column layout: [w1_0 | w3_0 | w1_1 | w3_1 | ...]

    return dict(w13t=w13t, w2t=w2t, dim=dim, hidden=hidden, dp=dp, hp=hp, th=th)


def feed_forward(x, params, *, tm=None, out_dtype=jnp.bfloat16):
    """x: (batch, seq, dim). Returns (batch, seq, dim) in `out_dtype`.

    Dropout = identity (eval mode). `tm=None` selects the M tile from the chip
    generation (roofline target) and an exact VMEM budget; passing `tm` sets an
    upper bound on the M tile instead of a hard value.
    """
    batch, seq, dim = x.shape
    assert dim == params["dim"]
    dp, hp, th = params["dp"], params["hp"], params["th"]
    w13t, w2t = params["w13t"], params["w2t"]

    M = batch * seq
    gen = _tpu_generation()
    tm_max, vmem_cap, n_cores = _GEN_CONFIG[gen]
    if tm is not None:
        tm_max = max(16, _round_up(int(tm), 16))

    out_bytes = jnp.dtype(out_dtype).itemsize
    # Planned x-tile byte width: bf16 slab if we must pad the feature dim, else the
    # caller's dtype passes straight through and is cast in-kernel.
    x_bytes_plan = 2 if dim != dp else jnp.dtype(x.dtype).itemsize

    # Exact VMEM budget (bytes). Double-buffer factor is explicit here; includes the
    # in-kernel h13/g intermediates and internal-scratch headroom (perf review).
    per_tm = (2 * dp * x_bytes_plan      # double-buffered x tile
              + 2 * dp * out_bytes       # double-buffered output tile
              + 4 * dp                   # f32 accumulator scratch (single copy)
              + 16 * th)                 # h13 (f32) + g (f32 + bf16) intermediates
    fixed = (2 * dp * (2 * th) * 2       # double-buffered fused [w1|w3] tile (bf16)
             + 2 * th * dp * 2           # double-buffered w2 tile (bf16)
             + (2 << 20))                # Mosaic internal-scratch headroom

    tm_fit = (vmem_cap - fixed) // per_tm
    tm_fit = max(16, min(tm_max, (tm_fit // 16) * 16))

    # Balance M across tiles instead of padding M up to a fixed tm (avoids ~2x padded
    # rows for awkward M); on v7x give the second TensorCore work for decode-sized M.
    n_m = max(1, _cdiv(M, tm_fit))
    if n_cores > 1 and n_m == 1 and M >= 32:
        n_m = 2
    tm_sel = _round_up(_cdiv(M, n_m), 16)
    Mp = n_m * tm_sel

    # Skip the separate pad/cast pass over activations when the layout already fits.
    needs_pad = (dim != dp) or (Mp != M)
    if needs_pad:
        x2d = jnp.zeros((Mp, dp), jnp.bfloat16).at[:M, :dim].set(
            x.reshape(M, dim).astype(jnp.bfloat16))
        x_bytes = 2
    else:
        x2d = x.reshape(M, dim)          # passthrough; cast to bf16 inside the kernel
        x_bytes = jnp.dtype(x2d.dtype).itemsize

    grid = (Mp // tm_sel, hp // th)

    vmem_limit = int(max(fixed + (2 * dp * x_bytes + 2 * dp * out_bytes + 4 * dp
                                  + 16 * th) * tm_sel,
                         4 << 20))

    out = pl.pallas_call(
        functools.partial(_ffn_kernel, th=th),
        out_shape=jax.ShapeDtypeStruct((Mp, dp), out_dtype),
        grid_spec=pltpu.PrefetchScalarGridSpec(
            num_scalar_prefetch=0,
            grid=grid,
            in_specs=[
                pl.BlockSpec((tm_sel, dp), lambda i, h: (i, 0)),     # x rows (reused over h)
                pl.BlockSpec((dp, 2 * th), lambda i, h: (0, h)),     # fused [w1|w3] hidden tile
                pl.BlockSpec((th, dp), lambda i, h: (h, 0)),         # w2 hidden tile
            ],
            out_specs=pl.BlockSpec((tm_sel, dp), lambda i, h: (i, 0)),
            scratch_shapes=[pltpu.VMEM((tm_sel, dp), jnp.float32)],
        ),
        compiler_params=pltpu.CompilerParams(
            dimension_semantics=("parallel", "arbitrary"),
            vmem_limit_bytes=vmem_limit,
        ),
    )(x2d, w13t, w2t)

    if needs_pad:
        out = out[:M, :dim]
    return out.reshape(batch, seq, dim)


def _reference(x, w1, w2, w3):
    h1 = x @ w1.T
    h3 = x @ w3.T
    h = (h1 * jax.nn.sigmoid(h1)) * h3
    return h @ w2.T


if __name__ == "__main__":
    # Module config: dim=32, hidden_dim=None, multiple_of=32, dropout=0.0
    dim = 32
    multiple_of = 32
    hidden = int(2 * (4 * dim) / 3)
    hidden = multiple_of * ((hidden + multiple_of - 1) // multiple_of)  # -> 96

    batch, seq = 2, 32   # M = 64 rows

    key = jax.random.PRNGKey(0)
    kx, k1, k2, k3 = jax.random.split(key, 4)
    x = jax.random.normal(kx, (batch, seq, dim), dtype=jnp.float32)
    # nn.Linear layout: (out_features, in_features)
    w1 = jax.random.normal(k1, (hidden, dim), dtype=jnp.float32) * 0.05
    w2 = jax.random.normal(k2, (dim, hidden), dtype=jnp.float32) * 0.05
    w3 = jax.random.normal(k3, (hidden, dim), dtype=jnp.float32) * 0.05

    params = prepare_ffn_weights(w1, w2, w3)      # one-time prep (bf16, padded, fused)
    out = feed_forward(x, params)                 # generation-aware auto tiling
    out = jax.block_until_ready(out)

    ref = _reference(x, w1, w2, w3)
    assert out.shape == (batch, seq, dim)
    # bf16 matmul inputs/outputs -> loosened tolerance vs the f32 reference (expected).
    assert jnp.allclose(out.astype(jnp.float32), ref, atol=2e-2, rtol=2e-2), \
        "mismatch vs reference"
    print("KERNEL_OK")
</pallas_src>

<mosaic_0001>
module attributes {stable_mosaic.version = 11 : i64} {
  func.func @_ffn_kernel(%arg0: i32, %arg1: i32, %arg2: memref<64x128xbf16, #tpu.memory_space<vmem>>, %arg3: memref<128x256xbf16, #tpu.memory_space<vmem>>, %arg4: memref<128x128xbf16, #tpu.memory_space<vmem>>, %arg5: memref<64x128xbf16, #tpu.memory_space<vmem>>, %arg6: memref<64x128xf32, #tpu.memory_space<vmem>>) attributes {dimension_semantics = [#tpu.dimension_semantics<parallel>, #tpu.dimension_semantics<arbitrary>], iteration_bounds = array<i64: 1, 1>, scalar_prefetch = 0 : i64, scratch_operands = 1 : i64, tpu.core_type = #tpu.core_type<tc>, window_params = [{transform_indices = @transform_0, window_bounds = array<i64: 64, 128>}, {transform_indices = @transform_1, window_bounds = array<i64: 128, 256>}, {transform_indices = @transform_2, window_bounds = array<i64: 128, 128>}, {transform_indices = @transform_3, window_bounds = array<i64: 64, 128>}]} {
    %c0_i32 = arith.constant 0 : i32
    %0 = arith.cmpi eq, %arg1, %c0_i32 : i32
    %1 = arith.extui %0 : i1 to i32
    %c0_i32_0 = arith.constant 0 : i32
    %2 = arith.cmpi ne, %1, %c0_i32_0 : i32
    scf.if %2 {
      %cst_14 = arith.constant 0.000000e+00 : f32
      %24 = vector.broadcast %cst_14 : f32 to vector<64x128xf32>
      %c0_15 = arith.constant 0 : index
      %c0_16 = arith.constant 0 : index
      %25 = vector.load %arg6[%c0_15, %c0_16] : memref<64x128xf32, #tpu.memory_space<vmem>>, vector<64x128xf32>
      tpu.vector_store %arg6[%c0_15, %c0_16], %24 {strides = array<i32>} : memref<64x128xf32, #tpu.memory_space<vmem>>, vector<64x128xf32>,
    } else {
    }
    %c0 = arith.constant 0 : index
    %c0_1 = arith.constant 0 : index
    %3 = vector.load %arg2[%c0, %c0_1] : memref<64x128xbf16, #tpu.memory_space<vmem>>, vector<64x128xbf16>
    %c0_2 = arith.constant 0 : index
    %c0_3 = arith.constant 0 : index
    %4 = vector.load %arg3[%c0_2, %c0_3] : memref<128x256xbf16, #tpu.memory_space<vmem>>, vector<128x256xbf16>
    %cst = arith.constant dense<0.000000e+00> : vector<64x256xf32>
    %5 = tpu.matmul %3, %4, %cst {dimension_numbers = #tpu.dot_dimension_numbers<[1], [0], [0], [1], [0, 0, 1, 1], [], []>} : vector<64x128xbf16>, vector<128x256xbf16>, vector<64x256xf32> -> vector<64x256xf32>
    %6 = vector.extract_strided_slice %5 {offsets = [0, 0], sizes = [64, 128], strides = [1, 1]} : vector<64x256xf32> to vector<64x128xf32>
    %7 = vector.extract_strided_slice %5 {offsets = [0, 128], sizes = [64, 128], strides = [1, 1]} : vector<64x256xf32> to vector<64x128xf32>
    %8 = arith.negf %6 : vector<64x128xf32>
    %9 = math.exp %8 : vector<64x128xf32>
    %cst_4 = arith.constant 1.000000e+00 : f32
    %10 = vector.broadcast %cst_4 : f32 to vector<64x128xf32>
    %11 = arith.addf %10, %9 : vector<64x128xf32>
    %12 = arith.divf %10, %11 : vector<64x128xf32>
    %13 = arith.mulf %6, %12 : vector<64x128xf32>
    %14 = arith.mulf %13, %7 : vector<64x128xf32>
    %c0_5 = arith.constant 0 : index
    %c0_6 = arith.constant 0 : index
    %15 = vector.load %arg6[%c0_5, %c0_6] : memref<64x128xf32, #tpu.memory_space<vmem>>, vector<64x128xf32>
    %16 = arith.truncf %14 : vector<64x128xf32> to vector<64x128xbf16>
    %c0_7 = arith.constant 0 : index
    %c0_8 = arith.constant 0 : index
    %17 = vector.load %arg4[%c0_7, %c0_8] : memref<128x128xbf16, #tpu.memory_space<vmem>>, vector<128x128xbf16>
    %cst_9 = arith.constant dense<0.000000e+00> : vector<64x128xf32>
    %18 = tpu.matmul %16, %17, %cst_9 {dimension_numbers = #tpu.dot_dimension_numbers<[1], [0], [0], [1], [0, 0, 1, 1], [], []>} : vector<64x128xbf16>, vector<128x128xbf16>, vector<64x128xf32> -> vector<64x128xf32>
    %19 = arith.addf %15, %18 : vector<64x128xf32>
    %c0_10 = arith.constant 0 : index
    %c0_11 = arith.constant 0 : index
    %20 = vector.load %arg6[%c0_10, %c0_11] : memref<64x128xf32, #tpu.memory_space<vmem>>, vector<64x128xf32>
    tpu.vector_store %arg6[%c0_10, %c0_11], %19 {strides = array<i32>} : memref<64x128xf32, #tpu.memory_space<vmem>>, vector<64x128xf32>,
    %c0_i32_12 = arith.constant 0 : i32
    %21 = arith.cmpi eq, %arg1, %c0_i32_12 : i32
    %22 = arith.extui %21 : i1 to i32
    %c0_i32_13 = arith.constant 0 : i32
    %23 = arith.cmpi ne, %22, %c0_i32_13 : i32
    scf.if %23 {
      %c0_14 = arith.constant 0 : index
      %c0_15 = arith.constant 0 : index
      %24 = vector.load %arg6[%c0_14, %c0_15] : memref<64x128xf32, #tpu.memory_space<vmem>>, vector<64x128xf32>
      %25 = arith.truncf %24 : vector<64x128xf32> to vector<64x128xbf16>
      %c0_16 = arith.constant 0 : index
      %c0_17 = arith.constant 0 : index
      %26 = vector.load %arg5[%c0_16, %c0_17] : memref<64x128xbf16, #tpu.memory_space<vmem>>, vector<64x128xbf16>
      tpu.vector_store %arg5[%c0_16, %c0_17], %25 {strides = array<i32>} : memref<64x128xbf16, #tpu.memory_space<vmem>>, vector<64x128xbf16>,
    } else {
    }
    return
  }
  func.func @transform_0(%arg0: i32, %arg1: i32) -> (i32, i32) {
    %c0_i32 = arith.constant 0 : i32
    %c0_i32_0 = arith.constant 0 : i32
    return %arg0, %c0_i32 : i32, i32
  }
  func.func @transform_1(%arg0: i32, %arg1: i32) -> (i32, i32) {
    %c0_i32 = arith.constant 0 : i32
    %c0_i32_0 = arith.constant 0 : i32
    return %c0_i32, %arg1 : i32, i32
  }
  func.func @transform_2(%arg0: i32, %arg1: i32) -> (i32, i32) {
    %c0_i32 = arith.constant 0 : i32
    %c0_i32_0 = arith.constant 0 : i32
    return %arg1, %c0_i32 : i32, i32
  }
  func.func @transform_3(%arg0: i32, %arg1: i32) -> (i32, i32) {
    %c0_i32 = arith.constant 0 : i32
    %c0_i32_0 = arith.constant 0 : i32
    return %arg0, %c0_i32 : i32, i32
  }
}

</mosaic_0001>

<llo_original>
// kernel: tpu_custom_call.1
$region0: #{tpu_custom_call.1}
  #allocation0 [shape = 'u32[]', space=smem, size = 0x4, offset = 0x4, fixed_abs, tag = 'smem constant byte address 0x4 - core index']
  #allocation1 [shape = 'u32[72,128]{1,0:T(1,128)}', space=vmem, size = 0x9000, scoped, tag = 'internal scratch']
  #allocation2 [shape = 'f32[64,128]{1,0:T(8,128)}', space=vmem, size = 0x8000, scoped, tag = 'scratch operand']
  %s0 = inlined_call_operand.hbm [shape: bf16[64,128], index: 0, kind: input, shape index: {}]
  %s1 = inlined_call_operand.hbm [shape: bf16[128,256], index: 1, kind: input, shape index: {}]
  %s2 = inlined_call_operand.hbm [shape: bf16[128,128], index: 2, kind: input, shape index: {}]
  %s3 = inlined_call_operand.hbm [shape: bf16[64,128], index: 3, kind: output, shape index: {}]
  %s4 = sld [smem:[#allocation0]]
  $region42: #{tpu_custom_call.1} parent=0
    _
  %s6 = ssub.s32 1, %s4
  %s7 = scalar_select 0, %s6, %s4
  $region1: #{tpu_custom_call.1} parent=0
    #allocation3 [shape = 'u8[16384]{0}', space=vmem, size = 0x4000, scoped, tag = 'input window, operand 0, single buffered']
    #allocation4 [shape = 's32[1]{0}', space=sflag, size = 0x4, scoped, tag = 'scoped memory for tpu_custom_call.1']
    #allocation5 [shape = 's32[1]{0}', space=sflag, size = 0x4, scoped, tag = 'scoped memory for tpu_custom_call.1']
    #allocation6 [shape = 'u8[65536]{0}', space=vmem, size = 0x10000, scoped, tag = 'input window, operand 1, single buffered']
    #allocation7 [shape = 's32[1]{0}', space=sflag, size = 0x4, scoped, tag = 'scoped memory for tpu_custom_call.1']
    #allocation8 [shape = 'u8[32768]{0}', space=vmem, size = 0x8000, scoped, tag = 'input window, operand 2, single buffered']
    #allocation9 [shape = 'u8[16384]{0}', space=vmem, size = 0x4000, scoped, tag = 'output window, operand 0, single buffered']
    %8 = vsyncpa [#allocation4], 0
    %9 = vsyncpa [#allocation7], 0
    %10 = vsyncpa [#allocation5], 0
    // Predicated region
    $region2: #{tpu_custom_call.1} parent=1 // pred_check
      _
    $region3: #{tpu_custom_call.1} parent=1 // pred_check_branch
      %12 = sbr.rel (0) target = $region5
    $region4: #{tpu_custom_call.1} parent=1 // pred_region
      %14 = vsyncadd [#allocation4], 0
      %s15 = sshll.u32 %s0, 4
      %s16 = int_to_ptr.hbm [resolvable:$true] %s15
      %s17 = sshll.u32 [#allocation3], 4
      %s18 = int_to_ptr.vmem [resolvable:$true] %s17
      %23 = dma.hbm_to_vmem [thread:$0]  %s16, 512, %s18, [#allocation4], 64, 64, 4
    $region5: #{tpu_custom_call.1} parent=1 // pred_fallthru
      _
    // Predicated region
    $region6: #{tpu_custom_call.1} parent=1 // pred_check
      _
    $region7: #{tpu_custom_call.1} parent=1 // pred_check_branch
      %25 = sbr.rel (0) target = $region9
    $region8: #{tpu_custom_call.1} parent=1 // pred_region
      %27 = vsyncadd [#allocation7], 0
      %s28 = sshll.u32 %s1, 4
      %s29 = int_to_ptr.hbm [resolvable:$true] %s28
      %s30 = sshll.u32 [#allocation6], 4
      %s31 = int_to_ptr.vmem [resolvable:$true] %s30
      %36 = dma.hbm_to_vmem [thread:$0]  %s29, 2048, %s31, [#allocation7], 128, 128, 8
    $region9: #{tpu_custom_call.1} parent=1 // pred_fallthru
      _
    // Predicated region
    $region10: #{tpu_custom_call.1} parent=1 // pred_check
      _
    $region11: #{tpu_custom_call.1} parent=1 // pred_check_branch
      %38 = sbr.rel (0) target = $region13
    $region12: #{tpu_custom_call.1} parent=1 // pred_region
      %40 = vsyncadd [#allocation7], 0
      %s41 = sshll.u32 %s2, 4
      %s42 = int_to_ptr.hbm [resolvable:$true] %s41
      %s43 = sshll.u32 [#allocation8], 4
      %s44 = int_to_ptr.vmem [resolvable:$true] %s43
      %49 = dma.hbm_to_vmem [thread:$0]  %s42, 1024, %s44, [#allocation7], 64, 64, 4
    $region13: #{tpu_custom_call.1} parent=1 // pred_fallthru
      _
    // Predicated region
    $region14: #{tpu_custom_call.1} parent=1 // pred_check
      _
    $region15: #{tpu_custom_call.1} parent=1 // pred_check_branch
      %51 = sbr.rel (0) target = $region17
    $region16: #{tpu_custom_call.1} parent=1 // pred_region
      %53 = dma.done [#allocation4], 512
    $region17: #{tpu_custom_call.1} parent=1 // pred_fallthru
      _
    // Predicated region
    $region18: #{tpu_custom_call.1} parent=1 // pred_check
      _
    $region19: #{tpu_custom_call.1} parent=1 // pred_check_branch
      %55 = sbr.rel (0) target = $region21
    $region20: #{tpu_custom_call.1} parent=1 // pred_region
      %57 = dma.done [#allocation7], 2048
    $region21: #{tpu_custom_call.1} parent=1 // pred_fallthru
      _
    // Predicated region
    $region22: #{tpu_custom_call.1} parent=1 // pred_check
      _
    $region23: #{tpu_custom_call.1} parent=1 // pred_check_branch
      %59 = sbr.rel (0) target = $region25
    $region24: #{tpu_custom_call.1} parent=1 // pred_region
      %61 = dma.done [#allocation7], 1024
    $region25: #{tpu_custom_call.1} parent=1 // pred_fallthru
      _
    %p62 = scmp.eq.s32.totalorder 0, 0
    // Predicated region
    $region26: #{tpu_custom_call.1} parent=1 // pred_check
      %p63 = pneg %p62
    $region27: #{tpu_custom_call.1} parent=1 // pred_check_branch
      %65 = sbr.rel (%p63) target = $region29
    $region28: #{tpu_custom_call.1} parent=1 // pred_region
      %66 = vst [vmem:[#allocation2] sm:$0xff] 0.0
      %67 = vst [vmem:[#allocation2 + $0x8] sm:$0xff] 0.0
      %68 = vst [vmem:[#allocation2 + $0x10] sm:$0xff] 0.0
      %69 = vst [vmem:[#allocation2 + $0x18] sm:$0xff] 0.0
      %70 = vst [vmem:[#allocation2 + $0x20] sm:$0xff] 0.0
      %71 = vst [vmem:[#allocation2 + $0x28] sm:$0xff] 0.0
      %72 = vst [vmem:[#allocation2 + $0x30] sm:$0xff] 0.0
      %73 = vst [vmem:[#allocation2 + $0x38] sm:$0xff] 0.0
    $region29: #{tpu_custom_call.1} parent=1 // pred_fallthru
      _
    %v74 = vld [vmem:[#allocation3] sm:$0xf]
    %v75 = vld [vmem:[#allocation3 + $0x4] sm:$0xf]
    %v76 = vld [vmem:[#allocation3 + $0x8] sm:$0xf]
    %v77 = vld [vmem:[#allocation3 + $0xc] sm:$0xf]
    %v78 = vld [vmem:[#allocation3 + $0x10] sm:$0xf]
    %v79 = vld [vmem:[#allocation3 + $0x14] sm:$0xf]
    %v80 = vld [vmem:[#allocation3 + $0x18] sm:$0xf]
    %v81 = vld [vmem:[#allocation3 + $0x1c] sm:$0xf]
    %v82 = vld [vmem:[#allocation6] sm:$0xff]
    %v83 = vld [vmem:[#allocation6 + $0x8] sm:$0xff]
    %v84 = vld [vmem:[#allocation6 + $0x10] sm:$0xff]
    %v85 = vld [vmem:[#allocation6 + $0x18] sm:$0xff]
    %v86 = vld [vmem:[#allocation6 + $0x20] sm:$0xff]
    %v87 = vld [vmem:[#allocation6 + $0x28] sm:$0xff]
    %v88 = vld [vmem:[#allocation6 + $0x30] sm:$0xff]
    %v89 = vld [vmem:[#allocation6 + $0x38] sm:$0xff]
    %v90 = vld [vmem:[#allocation6 + $0x40] sm:$0xff]
    %v91 = vld [vmem:[#allocation6 + $0x48] sm:$0xff]
    %v92 = vld [vmem:[#allocation6 + $0x50] sm:$0xff]
    %v93 = vld [vmem:[#allocation6 + $0x58] sm:$0xff]
    %v94 = vld [vmem:[#allocation6 + $0x60] sm:$0xff]
    %v95 = vld [vmem:[#allocation6 + $0x68] sm:$0xff]
    %v96 = vld [vmem:[#allocation6 + $0x70] sm:$0xff]
    %v97 = vld [vmem:[#allocation6 + $0x78] sm:$0xff]
    %v106 = vunpack.c.l.b16 %v74
    %v107 = vunpack.c.l.b16 %v75
    %v108 = vunpack.c.l.b16 %v76
    %v109 = vunpack.c.l.b16 %v77
    %v110 = vunpack.c.l.b16 %v78
    %v111 = vunpack.c.l.b16 %v79
    %v112 = vunpack.c.l.b16 %v80
    %v113 = vunpack.c.l.b16 %v81
    %v114 = vpack.c.b16 %v107, %v106
    %v115 = vpack.c.b16 %v109, %v108
    %v116 = vpack.c.b16 %v111, %v110
    %v117 = vpack.c.b16 %v113, %v112
    %v138 = vunpack.c.l.b16 %v82
    %v139 = vunpack.c.h.b16 %v82
    %v140 = vunpack.c.l.b16 %v83
    %v141 = vunpack.c.h.b16 %v83
    %v142 = vunpack.c.l.b16 %v84
    %v143 = vunpack.c.h.b16 %v84
    %v144 = vunpack.c.l.b16 %v85
    %v145 = vunpack.c.h.b16 %v85
    %v146 = vunpack.c.l.b16 %v86
    %v147 = vunpack.c.h.b16 %v86
    %v148 = vunpack.c.l.b16 %v87
    %v149 = vunpack.c.h.b16 %v87
    %v150 = vunpack.c.l.b16 %v88
    %v151 = vunpack.c.h.b16 %v88
    %v152 = vunpack.c.l.b16 %v89
    %v153 = vunpack.c.h.b16 %v89
    %v154 = vunpack.c.l.b16 %v90
    %v155 = vunpack.c.h.b16 %v90
    %v156 = vunpack.c.l.b16 %v91
    %v157 = vunpack.c.h.b16 %v91
    %v158 = vunpack.c.l.b16 %v92
    %v159 = vunpack.c.h.b16 %v92
    %v160 = vunpack.c.l.b16 %v93
    %v161 = vunpack.c.h.b16 %v93
    %v162 = vunpack.c.l.b16 %v94
    %v163 = vunpack.c.h.b16 %v94
    %v164 = vunpack.c.l.b16 %v95
    %v165 = vunpack.c.h.b16 %v95
    %v166 = vunpack.c.l.b16 %v96
    %v167 = vunpack.c.h.b16 %v96
    %v168 = vunpack.c.l.b16 %v97
    %v169 = vunpack.c.h.b16 %v97
    %v170 = vpack.c.b16 %v140, %v138
    %v171 = vpack.c.b16 %v141, %v139
    %v172 = vpack.c.b16 %v144, %v142
    %v173 = vpack.c.b16 %v145, %v143
    %v174 = vpack.c.b16 %v148, %v146
    %v175 = vpack.c.b16 %v149, %v147
    %v176 = vpack.c.b16 %v152, %v150
    %v177 = vpack.c.b16 %v153, %v151
    %v178 = vpack.c.b16 %v156, %v154
    %v179 = vpack.c.b16 %v157, %v155
    %v180 = vpack.c.b16 %v160, %v158
    %v181 = vpack.c.b16 %v161, %v159
    %v182 = vpack.c.b16 %v164, %v162
    %v183 = vpack.c.b16 %v165, %v163
    %v184 = vpack.c.b16 %v168, %v166
    %v185 = vpack.c.b16 %v169, %v167
    %202 = vmatpush.bf16.msra.mxu0 %v184
    %203 = vmatpush.bf16.msra.mxu0 %v182
    %204 = vmatpush.bf16.msra.mxu0 %v180
    %205 = vmatpush.bf16.msra.mxu0 %v178
    %206 = vmatpush.bf16.msra.mxu0 %v176
    %207 = vmatpush.bf16.msra.mxu0 %v174
    %208 = vmatpush.bf16.msra.mxu0 %v172
    %209 = vmatpush.bf16.msra.mxu0 %v170
    %210 = vmatmul.bf16.gmra.mxu0 %v114
    %v211 = vpop.f32.mrf.mxu0
    %v212 = vadd.f32 0.0, %v211
    %v213 = vpop.f32.mrf.mxu0
    %v214 = vadd.f32 0.0, %v213
    %215 = vmatmul.bf16.gmra.mxu0 %v115
    %v216 = vpop.f32.mrf.mxu0
    %v217 = vadd.f32 0.0, %v216
    %v218 = vpop.f32.mrf.mxu0
    %v219 = vadd.f32 0.0, %v218
    %220 = vmatmul.bf16.gmra.mxu0 %v116
    %v221 = vpop.f32.mrf.mxu0
    %v222 = vadd.f32 0.0, %v221
    %v223 = vpop.f32.mrf.mxu0
    %v224 = vadd.f32 0.0, %v223
    %225 = vmatmul.bf16.gmra.mxu0 %v117
    %v226 = vpop.f32.mrf.mxu0
    %v227 = vadd.f32 0.0, %v226
    %v228 = vpop.f32.mrf.mxu0
    %v229 = vadd.f32 0.0, %v228
    %230 = vdwg.mxu0
    %231 = vmatpush.bf16.msra.mxu0 %v185
    %232 = vmatpush.bf16.msra.mxu0 %v183
    %233 = vmatpush.bf16.msra.mxu0 %v181
    %234 = vmatpush.bf16.msra.mxu0 %v179
    %235 = vmatpush.bf16.msra.mxu0 %v177
    %236 = vmatpush.bf16.msra.mxu0 %v175
    %237 = vmatpush.bf16.msra.mxu0 %v173
    %238 = vmatpush.bf16.msra.mxu0 %v171
    %239 = vmatmul.bf16.gmra.mxu0 %v114
    %v240 = vpop.f32.mrf.mxu0
    %v241 = vadd.f32 0.0, %v240
    %v242 = vpop.f32.mrf.mxu0
    %v243 = vadd.f32 0.0, %v242
    %244 = vmatmul.bf16.gmra.mxu0 %v115
    %v245 = vpop.f32.mrf.mxu0
    %v246 = vadd.f32 0.0, %v245
    %v247 = vpop.f32.mrf.mxu0
    %v248 = vadd.f32 0.0, %v247
    %249 = vmatmul.bf16.gmra.mxu0 %v116
    %v250 = vpop.f32.mrf.mxu0
    %v251 = vadd.f32 0.0, %v250
    %v252 = vpop.f32.mrf.mxu0
    %v253 = vadd.f32 0.0, %v252
    %254 = vmatmul.bf16.gmra.mxu0 %v117
    %v255 = vpop.f32.mrf.mxu0
    %v256 = vadd.f32 0.0, %v255
    %v257 = vpop.f32.mrf.mxu0
    %v258 = vadd.f32 0.0, %v257
    %259 = vdwg.mxu0
    %v260 = vxor.u32 %v212, 2147483648
    %v261 = vxor.u32 %v214, 2147483648
    %v262 = vxor.u32 %v217, 2147483648
    %v263 = vxor.u32 %v219, 2147483648
    %v264 = vxor.u32 %v222, 2147483648
    %v265 = vxor.u32 %v224, 2147483648
    %v266 = vxor.u32 %v227, 2147483648
    %v267 = vxor.u32 %v229, 2147483648
    %v268 = vmul.f32 %v260, 1.442695
    %v269 = vpow.pop %v268
    %v270 = vmul.f32 %v261, 1.442695
    %v271 = vpow.pop %v270
    %v272 = vmul.f32 %v262, 1.442695
    %v273 = vpow.pop %v272
    %v274 = vmul.f32 %v263, 1.442695
    %v275 = vpow.pop %v274
    %v276 = vmul.f32 %v264, 1.442695
    %v277 = vpow.pop %v276
    %v278 = vmul.f32 %v265, 1.442695
    %v279 = vpow.pop %v278
    %v280 = vmul.f32 %v266, 1.442695
    %v281 = vpow.pop %v280
    %v282 = vmul.f32 %v267, 1.442695
    %v283 = vpow.pop %v282
    %v284 = vadd.f32 %v269, 1.0
    %v285 = vadd.f32 %v271, 1.0
    %v286 = vadd.f32 %v273, 1.0
    %v287 = vadd.f32 %v275, 1.0
    %v288 = vadd.f32 %v277, 1.0
    %v289 = vadd.f32 %v279, 1.0
    %v290 = vadd.f32 %v281, 1.0
    %v291 = vadd.f32 %v283, 1.0
    %v292 = vrcp.pop %v284
    %v293 = vmul.f32 %v284, %v292
    %v294 = vsub.f32 1.0, %v293
    %v295 = vmul.f32 %v292, %v294
    %v296 = vadd.f32 %v292, %v295
    %vm297 = vweird.f32 %v284
    %vm298 = vweird.f32 %v292
    %vm299 = vmor %vm297, %vm298
    %v300 = vsel %vm299, %v292, %v296
    %v301 = vand.u32 2147483647, %v284
    %vm302 = vcmp.eq.f32.partialorder %v301, 8.507059e+37
    %v303 = vand.u32 %v284, 2147483648
    %v304 = vor.u32 1.1754944e-38, %v303
    %v305 = vsel %vm302, %v304, %v300
    %v306 = vmul.f32 1.0, %v305
    %v307 = vrcp.pop %v285
    %v308 = vmul.f32 %v285, %v307
    %v309 = vsub.f32 1.0, %v308
    %v310 = vmul.f32 %v307, %v309
    %v311 = vadd.f32 %v307, %v310
    %vm312 = vweird.f32 %v285
    %vm313 = vweird.f32 %v307
    %vm314 = vmor %vm312, %vm313
    %v315 = vsel %vm314, %v307, %v311
    %v316 = vand.u32 2147483647, %v285
    %vm317 = vcmp.eq.f32.partialorder %v316, 8.507059e+37
    %v318 = vand.u32 %v285, 2147483648
    %v319 = vor.u32 1.1754944e-38, %v318
    %v320 = vsel %vm317, %v319, %v315
    %v321 = vmul.f32 1.0, %v320
    %v322 = vrcp.pop %v286
    %v323 = vmul.f32 %v286, %v322
    %v324 = vsub.f32 1.0, %v323
    %v325 = vmul.f32 %v322, %v324
    %v326 = vadd.f32 %v322, %v325
    %vm327 = vweird.f32 %v286
    %vm328 = vweird.f32 %v322
    %vm329 = vmor %vm327, %vm328
    %v330 = vsel %vm329, %v322, %v326
    %v331 = vand.u32 2147483647, %v286
    %vm332 = vcmp.eq.f32.partialorder %v331, 8.507059e+37
    %v333 = vand.u32 %v286, 2147483648
    %v334 = vor.u32 1.1754944e-38, %v333
    %v335 = vsel %vm332, %v334, %v330
    %v336 = vmul.f32 1.0, %v335
    %v337 = vrcp.pop %v287
    %v338 = vmul.f32 %v287, %v337
    %v339 = vsub.f32 1.0, %v338
    %v340 = vmul.f32 %v337, %v339
    %v341 = vadd.f32 %v337, %v340
    %vm342 = vweird.f32 %v287
    %vm343 = vweird.f32 %v337
    %vm344 = vmor %vm342, %vm343
    %v345 = vsel %vm344, %v337, %v341
    %v346 = vand.u32 2147483647, %v287
    %vm347 = vcmp.eq.f32.partialorder %v346, 8.507059e+37
    %v348 = vand.u32 %v287, 2147483648
    %v349 = vor.u32 1.1754944e-38, %v348
    %v350 = vsel %vm347, %v349, %v345
    %v351 = vmul.f32 1.0, %v350
    %v352 = vrcp.pop %v288
    %v353 = vmul.f32 %v288, %v352
    %v354 = vsub.f32 1.0, %v353
    %v355 = vmul.f32 %v352, %v354
    %v356 = vadd.f32 %v352, %v355
    %vm357 = vweird.f32 %v288
    %vm358 = vweird.f32 %v352
    %vm359 = vmor %vm357, %vm358
    %v360 = vsel %vm359, %v352, %v356
    %v361 = vand.u32 2147483647, %v288
    %vm362 = vcmp.eq.f32.partialorder %v361, 8.507059e+37
    %v363 = vand.u32 %v288, 2147483648
    %v364 = vor.u32 1.1754944e-38, %v363
    %v365 = vsel %vm362, %v364, %v360
    %v366 = vmul.f32 1.0, %v365
    %v367 = vrcp.pop %v289
    %v368 = vmul.f32 %v289, %v367
    %v369 = vsub.f32 1.0, %v368
    %v370 = vmul.f32 %v367, %v369
    %v371 = vadd.f32 %v367, %v370
    %vm372 = vweird.f32 %v289
    %vm373 = vweird.f32 %v367
    %vm374 = vmor %vm372, %vm373
    %v375 = vsel %vm374, %v367, %v371
    %v376 = vand.u32 2147483647, %v289
    %vm377 = vcmp.eq.f32.partialorder %v376, 8.507059e+37
    %v378 = vand.u32 %v289, 2147483648
    %v379 = vor.u32 1.1754944e-38, %v378
    %v380 = vsel %vm377, %v379, %v375
    %v381 = vmul.f32 1.0, %v380
    %v382 = vrcp.pop %v290
    %v383 = vmul.f32 %v290, %v382
    %v384 = vsub.f32 1.0, %v383
    %v385 = vmul.f32 %v382, %v384
    %v386 = vadd.f32 %v382, %v385
    %vm387 = vweird.f32 %v290
    %vm388 = vweird.f32 %v382
    %vm389 = vmor %vm387, %vm388
    %v390 = vsel %vm389, %v382, %v386
    %v391 = vand.u32 2147483647, %v290
    %vm392 = vcmp.eq.f32.partialorder %v391, 8.507059e+37
    %v393 = vand.u32 %v290, 2147483648
    %v394 = vor.u32 1.1754944e-38, %v393
    %v395 = vsel %vm392, %v394, %v390
    %v396 = vmul.f32 1.0, %v395
    %v397 = vrcp.pop %v291
    %v398 = vmul.f32 %v291, %v397
    %v399 = vsub.f32 1.0, %v398
    %v400 = vmul.f32 %v397, %v399
    %v401 = vadd.f32 %v397, %v400
    %vm402 = vweird.f32 %v291
    %vm403 = vweird.f32 %v397
    %vm404 = vmor %vm402, %vm403
    %v405 = vsel %vm404, %v397, %v401
    %v406 = vand.u32 2147483647, %v291
    %vm407 = vcmp.eq.f32.partialorder %v406, 8.507059e+37
    %v408 = vand.u32 %v291, 2147483648
    %v409 = vor.u32 1.1754944e-38, %v408
    %v410 = vsel %vm407, %v409, %v405
    %v411 = vmul.f32 1.0, %v410
    %v412 = vmul.f32 %v212, %v306
    %v413 = vmul.f32 %v214, %v321
    %v414 = vmul.f32 %v217, %v336
    %v415 = vmul.f32 %v219, %v351
    %v416 = vmul.f32 %v222, %v366
    %v417 = vmul.f32 %v224, %v381
    %v418 = vmul.f32 %v227, %v396
    %v419 = vmul.f32 %v229, %v411
    %v420 = vmul.f32 %v412, %v241
    %v421 = vmul.f32 %v413, %v243
    %v422 = vmul.f32 %v414, %v246
    %v423 = vmul.f32 %v415, %v248
    %v424 = vmul.f32 %v416, %v251
    %v425 = vmul.f32 %v417, %v253
    %v426 = vmul.f32 %v418, %v256
    %v427 = vmul.f32 %v419, %v258
    %v428 = vld [vmem:[#allocation2] sm:$0xff]
    %v429 = vld [vmem:[#allocation2 + $0x8] sm:$0xff]
    %v430 = vld [vmem:[#allocation2 + $0x10] sm:$0xff]
    %v431 = vld [vmem:[#allocation2 + $0x18] sm:$0xff]
    %v432 = vld [vmem:[#allocation2 + $0x20] sm:$0xff]
    %v433 = vld [vmem:[#allocation2 + $0x28] sm:$0xff]
    %v434 = vld [vmem:[#allocation2 + $0x30] sm:$0xff]
    %v435 = vld [vmem:[#allocation2 + $0x38] sm:$0xff]
    %v436 = vpack.c.bf16 %v421, %v420
    %v437 = vpack.c.bf16 %v423, %v422
    %v438 = vpack.c.bf16 %v425, %v424
    %v439 = vpack.c.bf16 %v427, %v426
    %v440 = vld [vmem:[#allocation8] sm:$0xf]
    %v441 = vld [vmem:[#allocation8 + $0x4] sm:$0xf]
    %v442 = vld [vmem:[#allocation8 + $0x8] sm:$0xf]
    %v443 = vld [vmem:[#allocation8 + $0xc] sm:$0xf]
    %v444 = vld [vmem:[#allocation8 + $0x10] sm:$0xf]
    %v445 = vld [vmem:[#allocation8 + $0x14] sm:$0xf]
    %v446 = vld [vmem:[#allocation8 + $0x18] sm:$0xf]
    %v447 = vld [vmem:[#allocation8 + $0x1c] sm:$0xf]
    %v448 = vld [vmem:[#allocation8 + $0x20] sm:$0xf]
    %v449 = vld [vmem:[#allocation8 + $0x24] sm:$0xf]
    %v450 = vld [vmem:[#allocation8 + $0x28] sm:$0xf]
    %v451 = vld [vmem:[#allocation8 + $0x2c] sm:$0xf]
    %v452 = vld [vmem:[#allocation8 + $0x30] sm:$0xf]
    %v453 = vld [vmem:[#allocation8 + $0x34] sm:$0xf]
    %v454 = vld [vmem:[#allocation8 + $0x38] sm:$0xf]
    %v455 = vld [vmem:[#allocation8 + $0x3c] sm:$0xf]
    %v472 = vunpack.c.l.b16 %v440
    %v473 = vunpack.c.l.b16 %v441
    %v474 = vunpack.c.l.b16 %v442
    %v475 = vunpack.c.l.b16 %v443
    %v476 = vunpack.c.l.b16 %v444
    %v477 = vunpack.c.l.b16 %v445
    %v478 = vunpack.c.l.b16 %v446
    %v479 = vunpack.c.l.b16 %v447
    %v480 = vunpack.c.l.b16 %v448
    %v481 = vunpack.c.l.b16 %v449
    %v482 = vunpack.c.l.b16 %v450
    %v483 = vunpack.c.l.b16 %v451
    %v484 = vunpack.c.l.b16 %v452
    %v485 = vunpack.c.l.b16 %v453
    %v486 = vunpack.c.l.b16 %v454
    %v487 = vunpack.c.l.b16 %v455
    %v488 = vpack.c.b16 %v473, %v472
    %v489 = vpack.c.b16 %v475, %v474
    %v490 = vpack.c.b16 %v477, %v476
    %v491 = vpack.c.b16 %v479, %v478
    %v492 = vpack.c.b16 %v481, %v480
    %v493 = vpack.c.b16 %v483, %v482
    %v494 = vpack.c.b16 %v485, %v484
    %v495 = vpack.c.b16 %v487, %v486
    %504 = vmatpush.bf16.msra.mxu0 %v495
    %505 = vmatpush.bf16.msra.mxu0 %v494
    %506 = vmatpush.bf16.msra.mxu0 %v493
    %507 = vmatpush.bf16.msra.mxu0 %v492
    %508 = vmatpush.bf16.msra.mxu0 %v491
    %509 = vmatpush.bf16.msra.mxu0 %v490
    %510 = vmatpush.bf16.msra.mxu0 %v489
    %511 = vmatpush.bf16.msra.mxu0 %v488
    %512 = vmatmul.bf16.gmra.mxu0 %v436
    %v513 = vpop.f32.mrf.mxu0
    %v514 = vadd.f32 0.0, %v513
    %v515 = vpop.f32.mrf.mxu0
    %v516 = vadd.f32 0.0, %v515
    %517 = vmatmul.bf16.gmra.mxu0 %v437
    %v518 = vpop.f32.mrf.mxu0
    %v519 = vadd.f32 0.0, %v518
    %v520 = vpop.f32.mrf.mxu0
    %v521 = vadd.f32 0.0, %v520
    %522 = vmatmul.bf16.gmra.mxu0 %v438
    %v523 = vpop.f32.mrf.mxu0
    %v524 = vadd.f32 0.0, %v523
    %v525 = vpop.f32.mrf.mxu0
    %v526 = vadd.f32 0.0, %v525
    %527 = vmatmul.bf16.gmra.mxu0 %v439
    %v528 = vpop.f32.mrf.mxu0
    %v529 = vadd.f32 0.0, %v528
    %v530 = vpop.f32.mrf.mxu0
    %v531 = vadd.f32 0.0, %v530
    %532 = vdwg.mxu0
    %v533 = vadd.f32 %v428, %v514
    %v534 = vadd.f32 %v429, %v516
    %v535 = vadd.f32 %v430, %v519
    %v536 = vadd.f32 %v431, %v521
    %v537 = vadd.f32 %v432, %v524
    %v538 = vadd.f32 %v433, %v526
    %v539 = vadd.f32 %v434, %v529
    %v540 = vadd.f32 %v435, %v531
    %541 = vst [vmem:[#allocation2] sm:$0xff] %v533
    %542 = vst [vmem:[#allocation2 + $0x8] sm:$0xff] %v534
    %543 = vst [vmem:[#allocation2 + $0x10] sm:$0xff] %v535
    %544 = vst [vmem:[#allocation2 + $0x18] sm:$0xff] %v536
    %545 = vst [vmem:[#allocation2 + $0x20] sm:$0xff] %v537
    %546 = vst [vmem:[#allocation2 + $0x28] sm:$0xff] %v538
    %547 = vst [vmem:[#allocation2 + $0x30] sm:$0xff] %v539
    %548 = vst [vmem:[#allocation2 + $0x38] sm:$0xff] %v540
    // Predicated region
    $region30: #{tpu_custom_call.1} parent=1 // pred_check
      %p549 = pneg %p62
    $region31: #{tpu_custom_call.1} parent=1 // pred_check_branch
      %551 = sbr.rel (%p549) target = $region33
    $region32: #{tpu_custom_call.1} parent=1 // pred_region
      %v552 = vld [vmem:[#allocation2] sm:$0xff]
      %v553 = vld [vmem:[#allocation2 + $0x8] sm:$0xff]
      %v554 = vld [vmem:[#allocation2 + $0x10] sm:$0xff]
      %v555 = vld [vmem:[#allocation2 + $0x18] sm:$0xff]
      %v556 = vld [vmem:[#allocation2 + $0x20] sm:$0xff]
      %v557 = vld [vmem:[#allocation2 + $0x28] sm:$0xff]
      %v558 = vld [vmem:[#allocation2 + $0x30] sm:$0xff]
      %v559 = vld [vmem:[#allocation2 + $0x38] sm:$0xff]
      %v560 = vpack.c.bf16 %v552, %v552
      %v561 = vpack.c.bf16 %v553, %v553
      %v562 = vpack.c.bf16 %v554, %v554
      %v563 = vpack.c.bf16 %v555, %v555
      %v564 = vpack.c.bf16 %v556, %v556
      %v565 = vpack.c.bf16 %v557, %v557
      %v566 = vpack.c.bf16 %v558, %v558
      %v567 = vpack.c.bf16 %v559, %v559
      %568 = vst [vmem:[#allocation9] sm:$0xf] %v560
      %569 = vst [vmem:[#allocation9 + $0x4] sm:$0xf] %v561
      %570 = vst [vmem:[#allocation9 + $0x8] sm:$0xf] %v562
      %571 = vst [vmem:[#allocation9 + $0xc] sm:$0xf] %v563
      %572 = vst [vmem:[#allocation9 + $0x10] sm:$0xf] %v564
      %573 = vst [vmem:[#allocation9 + $0x14] sm:$0xf] %v565
      %574 = vst [vmem:[#allocation9 + $0x18] sm:$0xf] %v566
      %575 = vst [vmem:[#allocation9 + $0x1c] sm:$0xf] %v567
    $region33: #{tpu_custom_call.1} parent=1 // pred_fallthru
      _
    // Predicated region
    $region34: #{tpu_custom_call.1} parent=1 // pred_check
      _
    $region35: #{tpu_custom_call.1} parent=1 // pred_check_branch
      %577 = sbr.rel (0) target = $region37
    $region36: #{tpu_custom_call.1} parent=1 // pred_region
      %579 = vsyncadd [#allocation5], 0
      %s580 = sshll.u32 [#allocation9], 4
      %s581 = int_to_ptr.vmem [resolvable:$true] %s580
      %s582 = sshll.u32 %s3, 4
      %s583 = int_to_ptr.hbm [resolvable:$true] %s582
      %588 = dma.vmem_to_hbm [thread:$0]  %s581, 512, %s583, [#allocation5], 64, 64, 4
    $region37: #{tpu_custom_call.1} parent=1 // pred_fallthru
      _
    // Predicated region
    $region38: #{tpu_custom_call.1} parent=1 // pred_check
      _
    $region39: #{tpu_custom_call.1} parent=1 // pred_check_branch
      %590 = sbr.rel (0) target = $region41
    $region40: #{tpu_custom_call.1} parent=1 // pred_region
      %592 = dma.done [#allocation5], 512
    $region41: #{tpu_custom_call.1} parent=1 // pred_fallthru
      _
    %593 = vsyncpa [#allocation4], 1
    %594 = vsyncpa [#allocation7], 1
    %595 = vsyncpa [#allocation5], 1

</llo_original>
